<compile_context>
chip_gen: v6e
topology: v6e:2x2x1
jax: 0.10.0
libtpu: 0.0.40
codegen_flags: <defaults>
</compile_context>

<pallas_src>
import jax
import jax.numpy as jnp
from jax.experimental import pallas as pl
from jax.experimental.pallas import tpu as pltpu

EPS = 1e-5
IN_DIM, H1, H2 = 9, 500, 100


def _bn_scale_shift(h, gamma, beta):
    """Training-mode BatchNorm1d as a per-feature (scale, shift).

    One-pass biased batch statistics:
        scale = gamma * rsqrt(var + eps)        (rsqrt -> EUP slot, ~free)
        shift = beta  - mean * scale
    so normalization is a single FMA `h * scale + shift`.
    """
    mean = jnp.mean(h, axis=0, keepdims=True)
    var = jnp.mean(h * h, axis=0, keepdims=True) - mean * mean
    scale = gamma * jax.lax.rsqrt(var + EPS)
    shift = beta - mean * scale
    return scale, shift


def linear_model_kernel(x_ref, w1_ref, w2_ref, s0_ref, s1_ref, s2_ref, out_ref):
    x = x_ref[...].astype(jnp.float32)                  # (B, 9)

    # Unpack the parameter slabs (static ref slices -> cheap VMEM loads).
    g0 = s0_ref[0:1, :]                                 # (1, 9)
    be0 = s0_ref[1:2, :]                                # (1, 9)
    b1 = s1_ref[0:1, :]                                 # (1, 500)
    g1 = s1_ref[1:2, :]
    be1 = s1_ref[2:3, :]
    b2 = s2_ref[0:1, :]                                 # (1, 100)
    g2 = s2_ref[1:2, :]
    be2 = s2_ref[2:3, :]
    w3 = s2_ref[3:4, :]                                 # (1, 100) lane-dense row
    b3 = s2_ref[4:5, 0:1]                               # (1, 1)

    # ---- bn0: tiny (B, 9) scale/shift --------------------------------------
    sc0, sh0 = _bn_scale_shift(x, g0, be0)
    xn = x * sc0 + sh0                                  # (B, 9)

    # ---- lin1 + relu on the MXU (K=9 -> single push/drain) -----------------
    h1 = jnp.dot(xn, w1_ref[...], preferred_element_type=jnp.float32) + b1
    h1 = jnp.maximum(h1, 0.0)                           # (B, 500)

    # ---- bn1: single FMA over (B, 500) -------------------------------------
    sc1, sh1 = _bn_scale_shift(h1, g1, be1)
    h1 = h1 * sc1 + sh1

    # ---- lin2 + relu on the MXU (500 x 100) --------------------------------
    h2 = jnp.dot(h1, w2_ref[...], preferred_element_type=jnp.float32) + b2
    h2 = jnp.maximum(h2, 0.0)                           # (B, 100)

    # ---- bn2 folded into lin3 (N=1 -> VPU mul + lane reduce, keeps (B,1)) --
    sc2, sh2 = _bn_scale_shift(h2, g2, be2)
    w3_eff = sc2 * w3                                   # fold gamma*inv_std into W
    b3_eff = jnp.sum(sh2 * w3, axis=-1, keepdims=True) + b3          # (1, 1)
    logits = jnp.sum(h2 * w3_eff, axis=-1, keepdims=True) + b3_eff   # (B, 1)

    out_ref[...] = jax.nn.sigmoid(logits)


def pack_params(p):
    """Pack the 11 small per-feature params into 3 slabs (fewer DMAs)."""
    s0 = jnp.concatenate([p["g0"], p["be0"]], axis=0)                      # (2, 9)
    s1 = jnp.concatenate([p["b1"], p["g1"], p["be1"]], axis=0)             # (3, 500)
    b3_row = jnp.pad(p["b3"], ((0, 0), (0, H2 - 1)))                       # (1, 100)
    s2 = jnp.concatenate([p["b2"], p["g2"], p["be2"], p["w3"], b3_row], 0)  # (5, 100)
    return s0, s1, s2


def linear_model_forward(x, params):
    B = x.shape[0]
    s0, s1, s2 = pack_params(params)
    vmem = pl.BlockSpec(memory_space=pltpu.MemorySpace.VMEM)
    out = pl.pallas_call(
        linear_model_kernel,
        out_shape=jax.ShapeDtypeStruct((B, 1), jnp.float32),
        in_specs=[vmem] * 6,        # 6 full-extent VMEM operands (x, w1, w2, 3 slabs)
        out_specs=vmem,
        # default scoped VMEM limit is plenty (<1 MiB total footprint)
    )(x, params["w1"], params["w2"], s0, s1, s2)
    return out[:, 0]  # (B,) — the module's squeeze(-1)


def init_params(key):
    """Deterministic init with PyTorch-default distributions.

    nn.Linear(in, out): weight (out, in), bias (out,), U(-1/sqrt(in), 1/sqrt(in)).
    w1/w2 stored transposed as (in, out) so the kernel does x @ W;
    w3 stored as the lane-dense (1, 100) row (PyTorch layout), used on the VPU.
    BatchNorm1d: gamma = 1, beta = 0.
    """
    def linear_init(k, fan_in, fan_out):
        kw, kb = jax.random.split(k)
        bound = 1.0 / (fan_in ** 0.5)
        w = jax.random.uniform(kw, (fan_in, fan_out), jnp.float32, -bound, bound)
        b = jax.random.uniform(kb, (1, fan_out), jnp.float32, -bound, bound)
        return w, b

    k1, k2, k3 = jax.random.split(key, 3)
    w1, b1 = linear_init(k1, IN_DIM, H1)     # (9, 500), (1, 500)
    w2, b2 = linear_init(k2, H1, H2)         # (500, 100), (1, 100)
    w3c, b3 = linear_init(k3, H2, 1)         # (100, 1), (1, 1)
    return {
        "w1": w1, "b1": b1,
        "w2": w2, "b2": b2,
        "w3": w3c.T, "b3": b3,               # w3 as (1, 100)
        "g0": jnp.ones((1, IN_DIM), jnp.float32), "be0": jnp.zeros((1, IN_DIM), jnp.float32),
        "g1": jnp.ones((1, H1), jnp.float32), "be1": jnp.zeros((1, H1), jnp.float32),
        "g2": jnp.ones((1, H2), jnp.float32), "be2": jnp.zeros((1, H2), jnp.float32),
    }


def reference_forward(x, p):
    """Pure-JAX reference in the un-folded, two-pass-variance form."""
    def bn(h, g, be):
        mean = jnp.mean(h, axis=0, keepdims=True)
        var = jnp.mean((h - mean) ** 2, axis=0, keepdims=True)
        return (h - mean) * jax.lax.rsqrt(var + EPS) * g + be

    h = bn(x, p["g0"], p["be0"])
    h = jnp.maximum(h @ p["w1"] + p["b1"], 0.0)
    h = bn(h, p["g1"], p["be1"])
    h = jnp.maximum(h @ p["w2"] + p["b2"], 0.0)
    h = bn(h, p["g2"], p["be2"])
    h = jax.nn.sigmoid(h @ p["w3"].T + p["b3"])
    return h[:, 0]


# TODO(synk): BN running-stat buffers (running_mean/var, momentum update) are not
# modeled; this kernel reproduces the training-mode forward math only.

if __name__ == "__main__":
    key = jax.random.PRNGKey(0)
    kx, kp = jax.random.split(key)

    B = 8  # BatchNorm1d in training mode needs B > 1
    x = jax.random.normal(kx, (B, IN_DIM), jnp.float32)
    params = init_params(kp)

    out = linear_model_forward(x, params)
    out = jax.block_until_ready(out)

    ref = reference_forward(x, params)
    assert out.shape == (B,), out.shape
    assert jnp.allclose(out, ref, atol=5e-5, rtol=5e-5), (out, ref)

    print("KERNEL_OK")
</pallas_src>

<mosaic_0001>
module attributes {stable_mosaic.version = 11 : i64} {
  func.func @linear_model_kernel(%arg0: memref<8x9xf32, #tpu.memory_space<vmem>>, %arg1: memref<9x500xf32, #tpu.memory_space<vmem>>, %arg2: memref<500x100xf32, #tpu.memory_space<vmem>>, %arg3: memref<2x9xf32, #tpu.memory_space<vmem>>, %arg4: memref<3x500xf32, #tpu.memory_space<vmem>>, %arg5: memref<5x100xf32, #tpu.memory_space<vmem>>, %arg6: memref<8x1xf32, #tpu.memory_space<vmem>>) attributes {dimension_semantics = [], scalar_prefetch = 0 : i64, scratch_operands = 0 : i64, tpu.core_type = #tpu.core_type<tc>} {
    %c0 = arith.constant 0 : index
    %c0_0 = arith.constant 0 : index
    %0 = vector.load %arg0[%c0, %c0_0] : memref<8x9xf32, #tpu.memory_space<vmem>>, vector<8x9xf32>
    %c0_1 = arith.constant 0 : index
    %c0_2 = arith.constant 0 : index
    %1 = vector.load %arg3[%c0_1, %c0_2] : memref<2x9xf32, #tpu.memory_space<vmem>>, vector<1x9xf32>
    %c1 = arith.constant 1 : index
    %c0_3 = arith.constant 0 : index
    %2 = vector.load %arg3[%c1, %c0_3] : memref<2x9xf32, #tpu.memory_space<vmem>>, vector<1x9xf32>
    %c0_4 = arith.constant 0 : index
    %c0_5 = arith.constant 0 : index
    %3 = vector.load %arg4[%c0_4, %c0_5] : memref<3x500xf32, #tpu.memory_space<vmem>>, vector<1x500xf32>
    %c1_6 = arith.constant 1 : index
    %c0_7 = arith.constant 0 : index
    %4 = vector.load %arg4[%c1_6, %c0_7] : memref<3x500xf32, #tpu.memory_space<vmem>>, vector<1x500xf32>
    %c2 = arith.constant 2 : index
    %c0_8 = arith.constant 0 : index
    %5 = vector.load %arg4[%c2, %c0_8] : memref<3x500xf32, #tpu.memory_space<vmem>>, vector<1x500xf32>
    %c0_9 = arith.constant 0 : index
    %c0_10 = arith.constant 0 : index
    %6 = vector.load %arg5[%c0_9, %c0_10] : memref<5x100xf32, #tpu.memory_space<vmem>>, vector<1x100xf32>
    %c1_11 = arith.constant 1 : index
    %c0_12 = arith.constant 0 : index
    %7 = vector.load %arg5[%c1_11, %c0_12] : memref<5x100xf32, #tpu.memory_space<vmem>>, vector<1x100xf32>
    %c2_13 = arith.constant 2 : index
    %c0_14 = arith.constant 0 : index
    %8 = vector.load %arg5[%c2_13, %c0_14] : memref<5x100xf32, #tpu.memory_space<vmem>>, vector<1x100xf32>
    %c3 = arith.constant 3 : index
    %c0_15 = arith.constant 0 : index
    %9 = vector.load %arg5[%c3, %c0_15] : memref<5x100xf32, #tpu.memory_space<vmem>>, vector<1x100xf32>
    %c4 = arith.constant 4 : index
    %c0_16 = arith.constant 0 : index
    %10 = vector.load %arg5[%c4, %c0_16] : memref<5x100xf32, #tpu.memory_space<vmem>>, vector<1x1xf32>
    %cst = arith.constant dense<0.000000e+00> : vector<9xf32>
    %11 = vector.multi_reduction <add>, %0, %cst [0] : vector<8x9xf32> to vector<9xf32>
    %12 = vector.shape_cast %11 : vector<9xf32> to vector<1x9xf32>
    %cst_17 = arith.constant 8.000000e+00 : f32
    %13 = vector.broadcast %cst_17 : f32 to vector<1x9xf32>
    %14 = arith.divf %12, %13 : vector<1x9xf32>
    %15 = arith.mulf %0, %0 : vector<8x9xf32>
    %cst_18 = arith.constant dense<0.000000e+00> : vector<9xf32>
    %16 = vector.multi_reduction <add>, %15, %cst_18 [0] : vector<8x9xf32> to vector<9xf32>
    %17 = vector.shape_cast %16 : vector<9xf32> to vector<1x9xf32>
    %cst_19 = arith.constant 8.000000e+00 : f32
    %18 = vector.broadcast %cst_19 : f32 to vector<1x9xf32>
    %19 = arith.divf %17, %18 : vector<1x9xf32>
    %20 = arith.mulf %14, %14 : vector<1x9xf32>
    %21 = arith.subf %19, %20 : vector<1x9xf32>
    %cst_20 = arith.constant 9.99999974E-6 : f32
    %22 = vector.broadcast %cst_20 : f32 to vector<1x9xf32>
    %23 = arith.addf %21, %22 : vector<1x9xf32>
    %24 = math.rsqrt %23 : vector<1x9xf32>
    %25 = arith.mulf %1, %24 : vector<1x9xf32>
    %26 = arith.mulf %14, %25 : vector<1x9xf32>
    %27 = arith.subf %2, %26 : vector<1x9xf32>
    %28 = vector.broadcast %25 : vector<1x9xf32> to vector<8x9xf32>
    %29 = arith.mulf %0, %28 : vector<8x9xf32>
    %30 = vector.broadcast %27 : vector<1x9xf32> to vector<8x9xf32>
    %31 = arith.addf %29, %30 : vector<8x9xf32>
    %c0_21 = arith.constant 0 : index
    %c0_22 = arith.constant 0 : index
    %32 = vector.load %arg1[%c0_21, %c0_22] : memref<9x500xf32, #tpu.memory_space<vmem>>, vector<9x500xf32>
    %cst_23 = arith.constant dense<0.000000e+00> : vector<8x500xf32>
    %33 = tpu.matmul %31, %32, %cst_23 {dimension_numbers = #tpu.dot_dimension_numbers<[1], [0], [0], [1], [0, 0, 1, 1], [], []>} : vector<8x9xf32>, vector<9x500xf32>, vector<8x500xf32> -> vector<8x500xf32>
    %34 = vector.broadcast %3 : vector<1x500xf32> to vector<8x500xf32>
    %35 = arith.addf %33, %34 : vector<8x500xf32>
    %cst_24 = arith.constant 0.000000e+00 : f32
    %36 = vector.broadcast %cst_24 : f32 to vector<8x500xf32>
    %37 = arith.maximumf %35, %36 : vector<8x500xf32>
    %cst_25 = arith.constant dense<0.000000e+00> : vector<500xf32>
    %38 = vector.multi_reduction <add>, %37, %cst_25 [0] : vector<8x500xf32> to vector<500xf32>
    %39 = vector.shape_cast %38 : vector<500xf32> to vector<1x500xf32>
    %cst_26 = arith.constant 8.000000e+00 : f32
    %40 = vector.broadcast %cst_26 : f32 to vector<1x500xf32>
    %41 = arith.divf %39, %40 : vector<1x500xf32>
    %42 = arith.mulf %37, %37 : vector<8x500xf32>
    %cst_27 = arith.constant dense<0.000000e+00> : vector<500xf32>
    %43 = vector.multi_reduction <add>, %42, %cst_27 [0] : vector<8x500xf32> to vector<500xf32>
    %44 = vector.shape_cast %43 : vector<500xf32> to vector<1x500xf32>
    %cst_28 = arith.constant 8.000000e+00 : f32
    %45 = vector.broadcast %cst_28 : f32 to vector<1x500xf32>
    %46 = arith.divf %44, %45 : vector<1x500xf32>
    %47 = arith.mulf %41, %41 : vector<1x500xf32>
    %48 = arith.subf %46, %47 : vector<1x500xf32>
    %cst_29 = arith.constant 9.99999974E-6 : f32
    %49 = vector.broadcast %cst_29 : f32 to vector<1x500xf32>
    %50 = arith.addf %48, %49 : vector<1x500xf32>
    %51 = math.rsqrt %50 : vector<1x500xf32>
    %52 = arith.mulf %4, %51 : vector<1x500xf32>
    %53 = arith.mulf %41, %52 : vector<1x500xf32>
    %54 = arith.subf %5, %53 : vector<1x500xf32>
    %55 = vector.broadcast %52 : vector<1x500xf32> to vector<8x500xf32>
    %56 = arith.mulf %37, %55 : vector<8x500xf32>
    %57 = vector.broadcast %54 : vector<1x500xf32> to vector<8x500xf32>
    %58 = arith.addf %56, %57 : vector<8x500xf32>
    %c0_30 = arith.constant 0 : index
    %c0_31 = arith.constant 0 : index
    %59 = vector.load %arg2[%c0_30, %c0_31] : memref<500x100xf32, #tpu.memory_space<vmem>>, vector<500x100xf32>
    %cst_32 = arith.constant dense<0.000000e+00> : vector<8x100xf32>
    %60 = tpu.matmul %58, %59, %cst_32 {dimension_numbers = #tpu.dot_dimension_numbers<[1], [0], [0], [1], [0, 0, 1, 1], [], []>} : vector<8x500xf32>, vector<500x100xf32>, vector<8x100xf32> -> vector<8x100xf32>
    %61 = vector.broadcast %6 : vector<1x100xf32> to vector<8x100xf32>
    %62 = arith.addf %60, %61 : vector<8x100xf32>
    %cst_33 = arith.constant 0.000000e+00 : f32
    %63 = vector.broadcast %cst_33 : f32 to vector<8x100xf32>
    %64 = arith.maximumf %62, %63 : vector<8x100xf32>
    %cst_34 = arith.constant dense<0.000000e+00> : vector<100xf32>
    %65 = vector.multi_reduction <add>, %64, %cst_34 [0] : vector<8x100xf32> to vector<100xf32>
    %66 = vector.shape_cast %65 : vector<100xf32> to vector<1x100xf32>
    %cst_35 = arith.constant 8.000000e+00 : f32
    %67 = vector.broadcast %cst_35 : f32 to vector<1x100xf32>
    %68 = arith.divf %66, %67 : vector<1x100xf32>
    %69 = arith.mulf %64, %64 : vector<8x100xf32>
    %cst_36 = arith.constant dense<0.000000e+00> : vector<100xf32>
    %70 = vector.multi_reduction <add>, %69, %cst_36 [0] : vector<8x100xf32> to vector<100xf32>
    %71 = vector.shape_cast %70 : vector<100xf32> to vector<1x100xf32>
    %cst_37 = arith.constant 8.000000e+00 : f32
    %72 = vector.broadcast %cst_37 : f32 to vector<1x100xf32>
    %73 = arith.divf %71, %72 : vector<1x100xf32>
    %74 = arith.mulf %68, %68 : vector<1x100xf32>
    %75 = arith.subf %73, %74 : vector<1x100xf32>
    %cst_38 = arith.constant 9.99999974E-6 : f32
    %76 = vector.broadcast %cst_38 : f32 to vector<1x100xf32>
    %77 = arith.addf %75, %76 : vector<1x100xf32>
    %78 = math.rsqrt %77 : vector<1x100xf32>
    %79 = arith.mulf %7, %78 : vector<1x100xf32>
    %80 = arith.mulf %68, %79 : vector<1x100xf32>
    %81 = arith.subf %8, %80 : vector<1x100xf32>
    %82 = arith.mulf %79, %9 : vector<1x100xf32>
    %83 = arith.mulf %81, %9 : vector<1x100xf32>
    %cst_39 = arith.constant dense<0.000000e+00> : vector<1xf32>
    %84 = vector.multi_reduction <add>, %83, %cst_39 [1] : vector<1x100xf32> to vector<1xf32>
    %85 = vector.shape_cast %84 : vector<1xf32> to vector<1x1xf32>
    %86 = arith.addf %85, %10 : vector<1x1xf32>
    %87 = vector.broadcast %82 : vector<1x100xf32> to vector<8x100xf32>
    %88 = arith.mulf %64, %87 : vector<8x100xf32>
    %cst_40 = arith.constant dense<0.000000e+00> : vector<8xf32>
    %89 = vector.multi_reduction <add>, %88, %cst_40 [1] : vector<8x100xf32> to vector<8xf32>
    %90 = vector.shape_cast %89 : vector<8xf32> to vector<8x1xf32>
    %91 = vector.broadcast %86 : vector<1x1xf32> to vector<8x1xf32>
    %92 = arith.addf %90, %91 : vector<8x1xf32>
    %93 = arith.negf %92 : vector<8x1xf32>
    %94 = math.exp %93 : vector<8x1xf32>
    %cst_41 = arith.constant 1.000000e+00 : f32
    %95 = vector.broadcast %cst_41 : f32 to vector<8x1xf32>
    %96 = arith.addf %95, %94 : vector<8x1xf32>
    %97 = arith.divf %95, %96 : vector<8x1xf32>
    %c0_42 = arith.constant 0 : index
    %c0_43 = arith.constant 0 : index
    %98 = vector.load %arg6[%c0_42, %c0_43] : memref<8x1xf32, #tpu.memory_space<vmem>>, vector<8x1xf32>
    tpu.vector_store %arg6[%c0_42, %c0_43], %97 {strides = array<i32>} : memref<8x1xf32, #tpu.memory_space<vmem>>, vector<8x1xf32>,
    return
  }
}

</mosaic_0001>

<llo_original>
// kernel: tpu_custom_call.1
$region0: #{tpu_custom_call.1}
  #allocation0 [shape = 'u32[]', space=smem, size = 0x4, offset = 0x4, fixed_abs, tag = 'smem constant byte address 0x4 - core index']
  #allocation1 [shape = 'u32[144,128]{1,0:T(1,128)}', space=vmem, size = 0x12000, scoped, tag = 'internal scratch']
  %s0 = inlined_call_operand.vmem [shape: f32[8,9], index: 0, kind: input, shape index: {}]
  %s1 = inlined_call_operand.vmem [shape: f32[9,500], index: 1, kind: input, shape index: {}]
  %s2 = inlined_call_operand.vmem [shape: f32[500,100], index: 2, kind: input, shape index: {}]
  %s3 = inlined_call_operand.vmem [shape: f32[2,9], index: 3, kind: input, shape index: {}]
  %s4 = inlined_call_operand.vmem [shape: f32[3,500], index: 4, kind: input, shape index: {}]
  %s5 = inlined_call_operand.vmem [shape: f32[5,100], index: 5, kind: input, shape index: {}]
  %s6 = inlined_call_operand.vmem [shape: f32[8,1], index: 6, kind: output, shape index: {}]
  %s7 = sld [smem:[#allocation0]]
  $region34: #{tpu_custom_call.1} parent=0
    _
  %s9 = ssub.s32 1, %s7
  %s10 = scalar_select 0, %s9, %s7
  // Predicated region
  $region2: #{tpu_custom_call.1} parent=0 // pred_check
    _
  $region3: #{tpu_custom_call.1} parent=0 // pred_check_branch
    %12 = sbr.rel (0) target = $region5
  $region4: #{tpu_custom_call.1} parent=0 // pred_region
    _
  $region5: #{tpu_custom_call.1} parent=0 // pred_fallthru
    _
  // Predicated region
  $region6: #{tpu_custom_call.1} parent=0 // pred_check
    _
  $region7: #{tpu_custom_call.1} parent=0 // pred_check_branch
    %14 = sbr.rel (0) target = $region9
  $region8: #{tpu_custom_call.1} parent=0 // pred_region
    _
  $region9: #{tpu_custom_call.1} parent=0 // pred_fallthru
    _
  // Predicated region
  $region10: #{tpu_custom_call.1} parent=0 // pred_check
    _
  $region11: #{tpu_custom_call.1} parent=0 // pred_check_branch
    %16 = sbr.rel (0) target = $region13
  $region12: #{tpu_custom_call.1} parent=0 // pred_region
    _
  $region13: #{tpu_custom_call.1} parent=0 // pred_fallthru
    _
  // Predicated region
  $region14: #{tpu_custom_call.1} parent=0 // pred_check
    _
  $region15: #{tpu_custom_call.1} parent=0 // pred_check_branch
    %18 = sbr.rel (0) target = $region17
  $region16: #{tpu_custom_call.1} parent=0 // pred_region
    _
  $region17: #{tpu_custom_call.1} parent=0 // pred_fallthru
    _
  // Predicated region
  $region18: #{tpu_custom_call.1} parent=0 // pred_check
    _
  $region19: #{tpu_custom_call.1} parent=0 // pred_check_branch
    %20 = sbr.rel (0) target = $region21
  $region20: #{tpu_custom_call.1} parent=0 // pred_region
    _
  $region21: #{tpu_custom_call.1} parent=0 // pred_fallthru
    _
  // Predicated region
  $region22: #{tpu_custom_call.1} parent=0 // pred_check
    _
  $region23: #{tpu_custom_call.1} parent=0 // pred_check_branch
    %22 = sbr.rel (0) target = $region25
  $region24: #{tpu_custom_call.1} parent=0 // pred_region
    _
  $region25: #{tpu_custom_call.1} parent=0 // pred_fallthru
    _
  %v23 = vld [vmem:[%s0] sm:$0xff]
  %v24 = vld [vmem:[%s3] sm:$0x1]
  %v25 = vld [vmem:[%s3 + $0x1] sm:$0x1]
  %v26 = vld [vmem:[%s4] ss:$4 sm:$0xf]
  %s27 = scalar_lea.vmem %s4, 1
  %v28 = vld [vmem:[%s27] ss:$4 sm:$0xf]
  %s29 = scalar_lea.vmem %s4, 2
  %v30 = vld [vmem:[%s29] ss:$4 sm:$0xf]
  %v31 = vld [vmem:[%s5] sm:$0x1]
  %v32 = vld [vmem:[%s5 + $0x1] sm:$0x1]
  %v33 = vld [vmem:[%s5 + $0x2] sm:$0x1]
  %v34 = vld [vmem:[%s5 + $0x3] sm:$0x1]
  %v35 = vld [vmem:[%s5 + $0x4] sm:$0x1]
  %vm36 = vcmask 72704
  %v37 = vsel %vm36, %v23, 0.0
  %v38 = vrot.slane %v37, 4
  %v39 = vadd.f32 %v37, %v38
  %v40 = vrot.slane %v39, 2
  %v41 = vadd.f32 %v39, %v40
  %v42 = vrot.slane %v41, 1
  %v43 = vadd.f32 %v41, %v42
  %v44 = vrcp.pop 8.0
  %v45 = vmul.f32 %v43, %v44
  %v46 = vmul.f32 %v23, %v23
  %v47 = vsel %vm36, %v46, 0.0
  %v48 = vrot.slane %v47, 4
  %v49 = vadd.f32 %v47, %v48
  %v50 = vrot.slane %v49, 2
  %v51 = vadd.f32 %v49, %v50
  %v52 = vrot.slane %v51, 1
  %v53 = vadd.f32 %v51, %v52
  %v54 = vmul.f32 %v53, %v44
  %v55 = vmul.f32 %v45, %v45
  %v56 = vsub.f32 %v54, %v55
  %v57 = vadd.f32 %v56, 1e-05
  %v58 = vrsqrt.pop %v57
  %v59 = vmul.f32 %v24, %v58
  %v60 = vmul.f32 %v45, %v59
  %v61 = vsub.f32 %v25, %v60
  %v62 = vlaneseq
  %v63 = vshrl.u32 %v62, 7
  %v64 = vsub.s32 0, %v63
  %v65 = vrot.slane %v59, %v64
  %v66 = vmul.f32 %v23, %v65
  %v67 = vlaneseq
  %v68 = vshrl.u32 %v67, 7
  %v69 = vsub.s32 0, %v68
  %v70 = vrot.slane %v61, %v69
  %v71 = vadd.f32 %v66, %v70
  %v72 = vld [vmem:[%s1] sm:$0xff]
  %v73 = vld [vmem:[%s1 + $0x8] sm:$0xff]
  %v74 = vld [vmem:[%s1 + $0x10] sm:$0xff]
  %v75 = vld [vmem:[%s1 + $0x18] sm:$0xff]
  %v76 = vld [vmem:[%s1 + $0x20] sm:$0x1]
  %v77 = vld [vmem:[%s1 + $0x28] sm:$0x1]
  %v78 = vld [vmem:[%s1 + $0x30] sm:$0x1]
  %v79 = vld [vmem:[%s1 + $0x38] sm:$0x1]
  %v81 = vlaneseq
  %v82 = vshrl.u32 %v81, 7
  %v83 = vsub.s32 0, %v82
  %v84 = vrot.slane %v26, %v83
  %v85 = vlaneseq
  %v86 = vshrl.u32 %v85, 7
  %v87 = vsub.s32 1, %v86
  %v88 = vrot.slane %v26, %v87
  %v89 = vlaneseq
  %v90 = vshrl.u32 %v89, 7
  %v91 = vsub.s32 2, %v90
  %v92 = vrot.slane %v26, %v91
  %v93 = vlaneseq
  %v94 = vshrl.u32 %v93, 7
  %v95 = vsub.s32 3, %v94
  %v96 = vrot.slane %v26, %v95
  %v102 = vsel %vm36, %v71, 0
  %vm104 = vcmask 1040384
  %v106 = vsel %vm104, %v76, 0
  %v109 = vsel %vm104, %v77, 0
  %v112 = vsel %vm104, %v78, 0
  %v115 = vsel %vm104, %v79, 0
  %117 = vmatprep.subr.mxu0 0.0
  %118 = vmatpush1.msra.mxu0 0.0
  %119 = vmatprep.subr.mxu0 0.0
  %120 = vmatpush1.msra.mxu0 0.0
  %121 = vmatprep.subr.mxu0 0.0
  %122 = vmatpush1.msra.mxu0 0.0
  %123 = vmatprep.subr.mxu0 0.0
  %124 = vmatpush1.msra.mxu0 0.0
  %125 = vmatprep.subr.mxu0 0.0
  %126 = vmatpush1.msra.mxu0 0.0
  %127 = vmatprep.subr.mxu0 0.0
  %128 = vmatpush1.msra.mxu0 0.0
  %129 = vmatprep.subr.mxu0 0.0
  %130 = vmatpush1.msra.mxu0 0.0
  %131 = vmatprep.subr.mxu0 0.0
  %132 = vmatpush1.msra.mxu0 0.0
  %133 = vmatprep.subr.mxu0 0.0
  %134 = vmatpush1.msra.mxu0 0.0
  %135 = vmatprep.subr.mxu0 0.0
  %136 = vmatpush1.msra.mxu0 0.0
  %137 = vmatprep.subr.mxu0 0.0
  %138 = vmatpush1.msra.mxu0 0.0
  %139 = vmatprep.subr.mxu0 0.0
  %140 = vmatpush1.msra.mxu0 0.0
  %141 = vmatprep.subr.mxu0 0.0
  %142 = vmatpush1.msra.mxu0 0.0
  %143 = vmatprep.subr.mxu0 0.0
  %144 = vmatpush1.msra.mxu0 0.0
  %145 = vmatprep.subr.mxu0 %v109
  %146 = vmatpush1.msra.mxu0 %v106
  %147 = vmatprep.subr.mxu0 %v73
  %148 = vmatpush1.msra.mxu0 %v72
  %149 = vmatprep.subr.mxu0 0.0
  %150 = vmatpush2.msra.mxu0 0.0
  %151 = vmatprep.subr.mxu0 0.0
  %152 = vmatpush2.msra.mxu0 0.0
  %153 = vmatprep.subr.mxu0 0.0
  %154 = vmatpush2.msra.mxu0 0.0
  %155 = vmatprep.subr.mxu0 0.0
  %156 = vmatpush2.msra.mxu0 0.0
  %157 = vmatprep.subr.mxu0 0.0
  %158 = vmatpush2.msra.mxu0 0.0
  %159 = vmatprep.subr.mxu0 0.0
  %160 = vmatpush2.msra.mxu0 0.0
  %161 = vmatprep.subr.mxu0 0.0
  %162 = vmatpush2.msra.mxu0 0.0
  %163 = vmatprep.subr.mxu0 0.0
  %164 = vmatpush2.msra.mxu0 0.0
  %165 = vmatprep.subr.mxu0 0.0
  %166 = vmatpush2.msra.mxu0 0.0
  %167 = vmatprep.subr.mxu0 0.0
  %168 = vmatpush2.msra.mxu0 0.0
  %169 = vmatprep.subr.mxu0 0.0
  %170 = vmatpush2.msra.mxu0 0.0
  %171 = vmatprep.subr.mxu0 0.0
  %172 = vmatpush2.msra.mxu0 0.0
  %173 = vmatprep.subr.mxu0 0.0
  %174 = vmatpush2.msra.mxu0 0.0
  %175 = vmatprep.subr.mxu0 0.0
  %176 = vmatpush2.msra.mxu0 0.0
  %177 = vmatprep.subr.mxu0 0.0
  %178 = vmatpush2.msra.mxu0 0.0
  %179 = vmatprep.subr.mxu0 0.0
  %180 = vmatpush2.msra.mxu0 0.0
  %181 = vmatprep.mubr.f32.mxu0 0.0
  %182 = vmatmul.mubr.f32.gmra.mxu0 %v102
  %v183 = vpop.f32.mrf.mxu0
  %v184 = vadd.f32 %v84, %v183
  %v185 = vpop.f32.mrf.mxu0
  %v186 = vadd.f32 %v88, %v185
  %187 = vdwg.mxu0
  %188 = vmatprep.subr.mxu0 0.0
  %189 = vmatpush1.msra.mxu0 0.0
  %190 = vmatprep.subr.mxu0 0.0
  %191 = vmatpush1.msra.mxu0 0.0
  %192 = vmatprep.subr.mxu0 0.0
  %193 = vmatpush1.msra.mxu0 0.0
  %194 = vmatprep.subr.mxu0 0.0
  %195 = vmatpush1.msra.mxu0 0.0
  %196 = vmatprep.subr.mxu0 0.0
  %197 = vmatpush1.msra.mxu0 0.0
  %198 = vmatprep.subr.mxu0 0.0
  %199 = vmatpush1.msra.mxu0 0.0
  %200 = vmatprep.subr.mxu0 0.0
  %201 = vmatpush1.msra.mxu0 0.0
  %202 = vmatprep.subr.mxu0 0.0
  %203 = vmatpush1.msra.mxu0 0.0
  %204 = vmatprep.subr.mxu0 0.0
  %205 = vmatpush1.msra.mxu0 0.0
  %206 = vmatprep.subr.mxu0 0.0
  %207 = vmatpush1.msra.mxu0 0.0
  %208 = vmatprep.subr.mxu0 0.0
  %209 = vmatpush1.msra.mxu0 0.0
  %210 = vmatprep.subr.mxu0 0.0
  %211 = vmatpush1.msra.mxu0 0.0
  %212 = vmatprep.subr.mxu0 0.0
  %213 = vmatpush1.msra.mxu0 0.0
  %214 = vmatprep.subr.mxu0 0.0
  %215 = vmatpush1.msra.mxu0 0.0
  %216 = vmatprep.subr.mxu0 %v115
  %217 = vmatpush1.msra.mxu0 %v112
  %218 = vmatprep.subr.mxu0 %v75
  %219 = vmatpush1.msra.mxu0 %v74
  %220 = vmatprep.subr.mxu0 0.0
  %221 = vmatpush2.msra.mxu0 0.0
  %222 = vmatprep.subr.mxu0 0.0
  %223 = vmatpush2.msra.mxu0 0.0
  %224 = vmatprep.subr.mxu0 0.0
  %225 = vmatpush2.msra.mxu0 0.0
  %226 = vmatprep.subr.mxu0 0.0
  %227 = vmatpush2.msra.mxu0 0.0
  %228 = vmatprep.subr.mxu0 0.0
  %229 = vmatpush2.msra.mxu0 0.0
  %230 = vmatprep.subr.mxu0 0.0
  %231 = vmatpush2.msra.mxu0 0.0
  %232 = vmatprep.subr.mxu0 0.0
  %233 = vmatpush2.msra.mxu0 0.0
  %234 = vmatprep.subr.mxu0 0.0
  %235 = vmatpush2.msra.mxu0 0.0
  %236 = vmatprep.subr.mxu0 0.0
  %237 = vmatpush2.msra.mxu0 0.0
  %238 = vmatprep.subr.mxu0 0.0
  %239 = vmatpush2.msra.mxu0 0.0
  %240 = vmatprep.subr.mxu0 0.0
  %241 = vmatpush2.msra.mxu0 0.0
  %242 = vmatprep.subr.mxu0 0.0
  %243 = vmatpush2.msra.mxu0 0.0
  %244 = vmatprep.subr.mxu0 0.0
  %245 = vmatpush2.msra.mxu0 0.0
  %246 = vmatprep.subr.mxu0 0.0
  %247 = vmatpush2.msra.mxu0 0.0
  %248 = vmatprep.subr.mxu0 0.0
  %249 = vmatpush2.msra.mxu0 0.0
  %250 = vmatprep.subr.mxu0 0.0
  %251 = vmatpush2.msra.mxu0 0.0
  %252 = vmatprep.mubr.f32.mxu0 0.0
  %253 = vmatmul.mubr.f32.gmra.mxu0 %v102
  %v254 = vpop.f32.mrf.mxu0
  %v255 = vadd.f32 %v92, %v254
  %v256 = vpop.f32.mrf.mxu0
  %v257 = vadd.f32 %v96, %v256
  %258 = vdwg.mxu0
  %v259 = vmax.f32 %v184, 0.0
  %v260 = vmax.f32 %v186, 0.0
  %v261 = vmax.f32 %v255, 0.0
  %v262 = vmax.f32 %v257, 0.0
  %v263 = vrot.slane %v259, 4
  %v264 = vadd.f32 %v259, %v263
  %v265 = vrot.slane %v264, 2
  %v266 = vadd.f32 %v264, %v265
  %v267 = vrot.slane %v266, 1
  %v268 = vadd.f32 %v266, %v267
  %v269 = vrot.slane %v260, 4
  %v270 = vadd.f32 %v260, %v269
  %v271 = vrot.slane %v270, 2
  %v272 = vadd.f32 %v270, %v271
  %v273 = vrot.slane %v272, 1
  %v274 = vadd.f32 %v272, %v273
  %v275 = vrot.slane %v261, 4
  %v276 = vadd.f32 %v261, %v275
  %v277 = vrot.slane %v276, 2
  %v278 = vadd.f32 %v276, %v277
  %v279 = vrot.slane %v278, 1
  %v280 = vadd.f32 %v278, %v279
  %vm281 = vcmask 949248
  %v282 = vsel %vm281, %v262, 0.0
  %v283 = vrot.slane %v282, 4
  %v284 = vadd.f32 %v282, %v283
  %v285 = vrot.slane %v284, 2
  %v286 = vadd.f32 %v284, %v285
  %v287 = vrot.slane %v286, 1
  %v288 = vadd.f32 %v286, %v287
  %v289 = vmul.f32 %v268, %v44
  %v290 = vmul.f32 %v274, %v44
  %v291 = vmul.f32 %v280, %v44
  %v292 = vmul.f32 %v288, %v44
  %v293 = vmul.f32 %v259, %v259
  %v294 = vmul.f32 %v260, %v260
  %v295 = vmul.f32 %v261, %v261
  %v296 = vmul.f32 %v262, %v262
  %v297 = vrot.slane %v293, 4
  %v298 = vadd.f32 %v293, %v297
  %v299 = vrot.slane %v298, 2
  %v300 = vadd.f32 %v298, %v299
  %v301 = vrot.slane %v300, 1
  %v302 = vadd.f32 %v300, %v301
  %v303 = vrot.slane %v294, 4
  %v304 = vadd.f32 %v294, %v303
  %v305 = vrot.slane %v304, 2
  %v306 = vadd.f32 %v304, %v305
  %v307 = vrot.slane %v306, 1
  %v308 = vadd.f32 %v306, %v307
  %v309 = vrot.slane %v295, 4
  %v310 = vadd.f32 %v295, %v309
  %v311 = vrot.slane %v310, 2
  %v312 = vadd.f32 %v310, %v311
  %v313 = vrot.slane %v312, 1
  %v314 = vadd.f32 %v312, %v313
  %v315 = vsel %vm281, %v296, 0.0
  %v316 = vrot.slane %v315, 4
  %v317 = vadd.f32 %v315, %v316
  %v318 = vrot.slane %v317, 2
  %v319 = vadd.f32 %v317, %v318
  %v320 = vrot.slane %v319, 1
  %v321 = vadd.f32 %v319, %v320
  %v322 = vmul.f32 %v302, %v44
  %v323 = vmul.f32 %v308, %v44
  %v324 = vmul.f32 %v314, %v44
  %v325 = vmul.f32 %v321, %v44
  %v326 = vmul.f32 %v289, %v289
  %v327 = vmul.f32 %v290, %v290
  %v328 = vmul.f32 %v291, %v291
  %v329 = vmul.f32 %v292, %v292
  %v330 = vsub.f32 %v322, %v326
  %v331 = vsub.f32 %v323, %v327
  %v332 = vsub.f32 %v324, %v328
  %v333 = vsub.f32 %v325, %v329
  %v334 = vadd.f32 %v330, 1e-05
  %v335 = vadd.f32 %v331, 1e-05
  %v336 = vadd.f32 %v332, 1e-05
  %v337 = vadd.f32 %v333, 1e-05
  %v338 = vrsqrt.pop %v334
  %v339 = vrsqrt.pop %v335
  %v340 = vrsqrt.pop %v336
  %v341 = vrsqrt.pop %v337
  %v346 = vcombine.low %v338, %v339
  %v347 = vcombine.low %v340, %v341
  %v349 = vunpack.c.l.s4 1966171168
  %v350 = vunpack.c.0.s8 %v349
  %v351 = vlaneseq
  %v352 = vshrl.u32 %v351, 7
  %v353 = vsub.s32 %v350, %v352
  %v354 = vrot.slane %v346, %v353
  %v356 = vunpack.c.l.s4 1966171168
  %v357 = vunpack.c.0.s8 %v356
  %v358 = vlaneseq
  %v359 = vshrl.u32 %v358, 7
  %v360 = vsub.s32 %v357, %v359
  %v361 = vrot.slane %v347, %v360
  %v362 = vcombine.low %v354, %v361
  %v364 = vunpack.c.l.s4 1966171168
  %v365 = vunpack.c.0.s8 %v364
  %v366 = vlaneseq
  %v367 = vshrl.u32 %v366, 7
  %v368 = vsub.s32 %v365, %v367
  %v369 = vrot.slane %v362, %v368
  %v371 = vmul.f32 %v28, %v369
  %v373 = vlaneseq
  %v374 = vshrl.u32 %v373, 7
  %v375 = vsub.s32 0, %v374
  %v376 = vrot.slane %v371, %v375
  %v377 = vlaneseq
  %v378 = vshrl.u32 %v377, 7
  %v379 = vsub.s32 1, %v378
  %v380 = vrot.slane %v371, %v379
  %v381 = vlaneseq
  %v382 = vshrl.u32 %v381, 7
  %v383 = vsub.s32 2, %v382
  %v384 = vrot.slane %v371, %v383
  %v385 = vlaneseq
  %v386 = vshrl.u32 %v385, 7
  %v387 = vsub.s32 3, %v386
  %v388 = vrot.slane %v371, %v387
  %v393 = vmul.f32 %v289, %v376
  %v394 = vmul.f32 %v290, %v380
  %v395 = vmul.f32 %v291, %v384
  %v396 = vmul.f32 %v292, %v388
  %v401 = vcombine.low %v393, %v394
  %v402 = vcombine.low %v395, %v396
  %v404 = vunpack.c.l.s4 1966171168
  %v405 = vunpack.c.0.s8 %v404
  %v406 = vlaneseq
  %v407 = vshrl.u32 %v406, 7
  %v408 = vsub.s32 %v405, %v407
  %v409 = vrot.slane %v401, %v408
  %v411 = vunpack.c.l.s4 1966171168
  %v412 = vunpack.c.0.s8 %v411
  %v413 = vlaneseq
  %v414 = vshrl.u32 %v413, 7
  %v415 = vsub.s32 %v412, %v414
  %v416 = vrot.slane %v402, %v415
  %v417 = vcombine.low %v409, %v416
  %v419 = vunpack.c.l.s4 1966171168
  %v420 = vunpack.c.0.s8 %v419
  %v421 = vlaneseq
  %v422 = vshrl.u32 %v421, 7
  %v423 = vsub.s32 %v420, %v422
  %v424 = vrot.slane %v417, %v423
  %v426 = vsub.f32 %v30, %v424
  %v427 = vmul.f32 %v259, %v376
  %v428 = vmul.f32 %v260, %v380
  %v429 = vmul.f32 %v261, %v384
  %v430 = vmul.f32 %v262, %v388
  %v432 = vlaneseq
  %v433 = vshrl.u32 %v432, 7
  %v434 = vsub.s32 0, %v433
  %v435 = vrot.slane %v426, %v434
  %v436 = vlaneseq
  %v437 = vshrl.u32 %v436, 7
  %v438 = vsub.s32 1, %v437
  %v439 = vrot.slane %v426, %v438
  %v440 = vlaneseq
  %v441 = vshrl.u32 %v440, 7
  %v442 = vsub.s32 2, %v441
  %v443 = vrot.slane %v426, %v442
  %v444 = vlaneseq
  %v445 = vshrl.u32 %v444, 7
  %v446 = vsub.s32 3, %v445
  %v447 = vrot.slane %v426, %v446
  %v452 = vadd.f32 %v427, %v435
  %v453 = vadd.f32 %v428, %v439
  %v454 = vadd.f32 %v429, %v443
  %v455 = vadd.f32 %v430, %v447
  %v456 = vld [vmem:[%s2] sm:$0xff]
  %v457 = vld [vmem:[%s2 + $0x8] sm:$0xff]
  %v458 = vld [vmem:[%s2 + $0x10] sm:$0xff]
  %v459 = vld [vmem:[%s2 + $0x18] sm:$0xff]
  %v460 = vld [vmem:[%s2 + $0x20] sm:$0xff]
  %v461 = vld [vmem:[%s2 + $0x28] sm:$0xff]
  %v462 = vld [vmem:[%s2 + $0x30] sm:$0xff]
  %v463 = vld [vmem:[%s2 + $0x38] sm:$0xff]
  %v464 = vld [vmem:[%s2 + $0x40] sm:$0xff]
  %v465 = vld [vmem:[%s2 + $0x48] sm:$0xff]
  %v466 = vld [vmem:[%s2 + $0x50] sm:$0xff]
  %v467 = vld [vmem:[%s2 + $0x58] sm:$0xff]
  %v468 = vld [vmem:[%s2 + $0x60] sm:$0xff]
  %v469 = vld [vmem:[%s2 + $0x68] sm:$0xff]
  %v470 = vld [vmem:[%s2 + $0x70] sm:$0xff]
  %v471 = vld [vmem:[%s2 + $0x78] sm:$0xff]
  %v472 = vld [vmem:[%s2 + $0x80] sm:$0xff]
  %v473 = vld [vmem:[%s2 + $0x88] sm:$0xff]
  %v474 = vld [vmem:[%s2 + $0x90] sm:$0xff]
  %v475 = vld [vmem:[%s2 + $0x98] sm:$0xff]
  %v476 = vld [vmem:[%s2 + $0xa0] sm:$0xff]
  %v477 = vld [vmem:[%s2 + $0xa8] sm:$0xff]
  %v478 = vld [vmem:[%s2 + $0xb0] sm:$0xff]
  %v479 = vld [vmem:[%s2 + $0xb8] sm:$0xff]
  %v480 = vld [vmem:[%s2 + $0xc0] sm:$0xff]
  %v481 = vld [vmem:[%s2 + $0xc8] sm:$0xff]
  %v482 = vld [vmem:[%s2 + $0xd0] sm:$0xff]
  %v483 = vld [vmem:[%s2 + $0xd8] sm:$0xff]
  %v484 = vld [vmem:[%s2 + $0xe0] sm:$0xff]
  %v485 = vld [vmem:[%s2 + $0xe8] sm:$0xff]
  %v486 = vld [vmem:[%s2 + $0xf0] sm:$0xff]
  %v487 = vld [vmem:[%s2 + $0xf8] sm:$0xff]
  %v488 = vld [vmem:[%s2 + $0x100] sm:$0xff]
  %v489 = vld [vmem:[%s2 + $0x108] sm:$0xff]
  %v490 = vld [vmem:[%s2 + $0x110] sm:$0xff]
  %v491 = vld [vmem:[%s2 + $0x118] sm:$0xff]
  %v492 = vld [vmem:[%s2 + $0x120] sm:$0xff]
  %v493 = vld [vmem:[%s2 + $0x128] sm:$0xff]
  %v494 = vld [vmem:[%s2 + $0x130] sm:$0xff]
  %v495 = vld [vmem:[%s2 + $0x138] sm:$0xff]
  %v496 = vld [vmem:[%s2 + $0x140] sm:$0xff]
  %v497 = vld [vmem:[%s2 + $0x148] sm:$0xff]
  %v498 = vld [vmem:[%s2 + $0x150] sm:$0xff]
  %v499 = vld [vmem:[%s2 + $0x158] sm:$0xff]
  %v500 = vld [vmem:[%s2 + $0x160] sm:$0xff]
  %v501 = vld [vmem:[%s2 + $0x168] sm:$0xff]
  %v502 = vld [vmem:[%s2 + $0x170] sm:$0xff]
  %v503 = vld [vmem:[%s2 + $0x178] sm:$0xff]
  %v504 = vld [vmem:[%s2 + $0x180] sm:$0xff]
  %v505 = vld [vmem:[%s2 + $0x188] sm:$0xff]
  %v506 = vld [vmem:[%s2 + $0x190] sm:$0xff]
  %v507 = vld [vmem:[%s2 + $0x198] sm:$0xff]
  %v508 = vld [vmem:[%s2 + $0x1a0] sm:$0xff]
  %v509 = vld [vmem:[%s2 + $0x1a8] sm:$0xff]
  %v510 = vld [vmem:[%s2 + $0x1b0] sm:$0xff]
  %v511 = vld [vmem:[%s2 + $0x1b8] sm:$0xff]
  %v512 = vld [vmem:[%s2 + $0x1c0] sm:$0xff]
  %v513 = vld [vmem:[%s2 + $0x1c8] sm:$0xff]
  %v514 = vld [vmem:[%s2 + $0x1d0] sm:$0xff]
  %v515 = vld [vmem:[%s2 + $0x1d8] sm:$0xff]
  %v516 = vld [vmem:[%s2 + $0x1e0] sm:$0xff]
  %v517 = vld [vmem:[%s2 + $0x1e8] sm:$0xff]
  %v518 = vld [vmem:[%s2 + $0x1f0] sm:$0xf]
  %v519 = vlaneseq
  %v520 = vshrl.u32 %v519, 7
  %v521 = vsub.s32 0, %v520
  %v522 = vrot.slane %v31, %v521
  %v524 = vsel %vm281, %v455, 0
  %vm526 = vcmask 1043456
  %v528 = vsel %vm526, %v518, 0
  %530 = vmatprep.subr.mxu0 0.0
  %531 = vmatpush1.msra.mxu0 %v471
  %532 = vmatprep.subr.mxu0 0.0
  %533 = vmatpush1.msra.mxu0 %v470
  %534 = vmatprep.subr.mxu0 0.0
  %535 = vmatpush1.msra.mxu0 %v469
  %536 = vmatprep.subr.mxu0 0.0
  %537 = vmatpush1.msra.mxu0 %v468
  %538 = vmatprep.subr.mxu0 0.0
  %539 = vmatpush1.msra.mxu0 %v467
  %540 = vmatprep.subr.mxu0 0.0
  %541 = vmatpush1.msra.mxu0 %v466
  %542 = vmatprep.subr.mxu0 0.0
  %543 = vmatpush1.msra.mxu0 %v465
  %544 = vmatprep.subr.mxu0 0.0
  %545 = vmatpush1.msra.mxu0 %v464
  %546 = vmatprep.subr.mxu0 0.0
  %547 = vmatpush1.msra.mxu0 %v463
  %548 = vmatprep.subr.mxu0 0.0
  %549 = vmatpush1.msra.mxu0 %v462
  %550 = vmatprep.subr.mxu0 0.0
  %551 = vmatpush1.msra.mxu0 %v461
  %552 = vmatprep.subr.mxu0 0.0
  %553 = vmatpush1.msra.mxu0 %v460
  %554 = vmatprep.subr.mxu0 0.0
  %555 = vmatpush1.msra.mxu0 %v459
  %556 = vmatprep.subr.mxu0 0.0
  %557 = vmatpush1.msra.mxu0 %v458
  %558 = vmatprep.subr.mxu0 0.0
  %559 = vmatpush1.msra.mxu0 %v457
  %560 = vmatprep.subr.mxu0 0.0
  %561 = vmatpush1.msra.mxu0 %v456
  %562 = vmatprep.subr.mxu0 0.0
  %563 = vmatpush2.msra.mxu0 %v487
  %564 = vmatprep.subr.mxu0 0.0
  %565 = vmatpush2.msra.mxu0 %v486
  %566 = vmatprep.subr.mxu0 0.0
  %567 = vmatpush2.msra.mxu0 %v485
  %568 = vmatprep.subr.mxu0 0.0
  %569 = vmatpush2.msra.mxu0 %v484
  %570 = vmatprep.subr.mxu0 0.0
  %571 = vmatpush2.msra.mxu0 %v483
  %572 = vmatprep.subr.mxu0 0.0
  %573 = vmatpush2.msra.mxu0 %v482
  %574 = vmatprep.subr.mxu0 0.0
  %575 = vmatpush2.msra.mxu0 %v481
  %576 = vmatprep.subr.mxu0 0.0
  %577 = vmatpush2.msra.mxu0 %v480
  %578 = vmatprep.subr.mxu0 0.0
  %579 = vmatpush2.msra.mxu0 %v479
  %580 = vmatprep.subr.mxu0 0.0
  %581 = vmatpush2.msra.mxu0 %v478
  %582 = vmatprep.subr.mxu0 0.0
  %583 = vmatpush2.msra.mxu0 %v477
  %584 = vmatprep.subr.mxu0 0.0
  %585 = vmatpush2.msra.mxu0 %v476
  %586 = vmatprep.subr.mxu0 0.0
  %587 = vmatpush2.msra.mxu0 %v475
  %588 = vmatprep.subr.mxu0 0.0
  %589 = vmatpush2.msra.mxu0 %v474
  %590 = vmatprep.subr.mxu0 0.0
  %591 = vmatpush2.msra.mxu0 %v473
  %592 = vmatprep.subr.mxu0 0.0
  %593 = vmatpush2.msra.mxu0 %v472
  %594 = vmatprep.mubr.f32.mxu0 %v453
  %595 = vmatmul.mubr.f32.gmra.mxu0 %v452
  %v596 = vpop.f32.mrf.mxu0
  %v597 = vadd.f32 %v522, %v596
  %v598 = vpop.f32.mrf.mxu0
  %599 = vdwg.mxu0
  %600 = vmatprep.subr.mxu0 0.0
  %601 = vmatpush1.msra.mxu0 %v503
  %602 = vmatprep.subr.mxu0 0.0
  %603 = vmatpush1.msra.mxu0 %v502
  %604 = vmatprep.subr.mxu0 0.0
  %605 = vmatpush1.msra.mxu0 %v501
  %606 = vmatprep.subr.mxu0 0.0
  %607 = vmatpush1.msra.mxu0 %v500
  %608 = vmatprep.subr.mxu0 0.0
  %609 = vmatpush1.msra.mxu0 %v499
  %610 = vmatprep.subr.mxu0 0.0
  %611 = vmatpush1.msra.mxu0 %v498
  %612 = vmatprep.subr.mxu0 0.0
  %613 = vmatpush1.msra.mxu0 %v497
  %614 = vmatprep.subr.mxu0 0.0
  %615 = vmatpush1.msra.mxu0 %v496
  %616 = vmatprep.subr.mxu0 0.0
  %617 = vmatpush1.msra.mxu0 %v495
  %618 = vmatprep.subr.mxu0 0.0
  %619 = vmatpush1.msra.mxu0 %v494
  %620 = vmatprep.subr.mxu0 0.0
  %621 = vmatpush1.msra.mxu0 %v493
  %622 = vmatprep.subr.mxu0 0.0
  %623 = vmatpush1.msra.mxu0 %v492
  %624 = vmatprep.subr.mxu0 0.0
  %625 = vmatpush1.msra.mxu0 %v491
  %626 = vmatprep.subr.mxu0 0.0
  %627 = vmatpush1.msra.mxu0 %v490
  %628 = vmatprep.subr.mxu0 0.0
  %629 = vmatpush1.msra.mxu0 %v489
  %630 = vmatprep.subr.mxu0 0.0
  %631 = vmatpush1.msra.mxu0 %v488
  %632 = vmatprep.subr.mxu0 0.0
  %633 = vmatpush2.msra.mxu0 0.0
  %634 = vmatprep.subr.mxu0 0.0
  %635 = vmatpush2.msra.mxu0 %v528
  %636 = vmatprep.subr.mxu0 0.0
  %637 = vmatpush2.msra.mxu0 %v517
  %638 = vmatprep.subr.mxu0 0.0
  %639 = vmatpush2.msra.mxu0 %v516
  %640 = vmatprep.subr.mxu0 0.0
  %641 = vmatpush2.msra.mxu0 %v515
  %642 = vmatprep.subr.mxu0 0.0
  %643 = vmatpush2.msra.mxu0 %v514
  %644 = vmatprep.subr.mxu0 0.0
  %645 = vmatpush2.msra.mxu0 %v513
  %646 = vmatprep.subr.mxu0 0.0
  %647 = vmatpush2.msra.mxu0 %v512
  %648 = vmatprep.subr.mxu0 0.0
  %649 = vmatpush2.msra.mxu0 %v511
  %650 = vmatprep.subr.mxu0 0.0
  %651 = vmatpush2.msra.mxu0 %v510
  %652 = vmatprep.subr.mxu0 0.0
  %653 = vmatpush2.msra.mxu0 %v509
  %654 = vmatprep.subr.mxu0 0.0
  %655 = vmatpush2.msra.mxu0 %v508
  %656 = vmatprep.subr.mxu0 0.0
  %657 = vmatpush2.msra.mxu0 %v507
  %658 = vmatprep.subr.mxu0 0.0
  %659 = vmatpush2.msra.mxu0 %v506
  %660 = vmatprep.subr.mxu0 0.0
  %661 = vmatpush2.msra.mxu0 %v505
  %662 = vmatprep.subr.mxu0 0.0
  %663 = vmatpush2.msra.mxu0 %v504
  %664 = vmatprep.mubr.f32.mxu0 %v524
  %665 = vmatmul.mubr.f32.gmra.mxu0 %v454
  %v666 = vpop.f32.mrf.mxu0
  %v667 = vadd.f32 %v597, %v666
  %v668 = vpop.f32.mrf.mxu0
  %669 = vdwg.mxu0
  %v670 = vmax.f32 %v667, 0.0
  %vm671 = vcmask 818176
  %v672 = vsel %vm671, %v670, 0.0
  %v673 = vrot.slane %v672, 4
  %v674 = vadd.f32 %v672, %v673
  %v675 = vrot.slane %v674, 2
  %v676 = vadd.f32 %v674, %v675
  %v677 = vrot.slane %v676, 1
  %v678 = vadd.f32 %v676, %v677
  %v679 = vmul.f32 %v678, %v44
  %v680 = vmul.f32 %v670, %v670
  %v681 = vsel %vm671, %v680, 0.0
  %v682 = vrot.slane %v681, 4
  %v683 = vadd.f32 %v681, %v682
  %v684 = vrot.slane %v683, 2
  %v685 = vadd.f32 %v683, %v684
  %v686 = vrot.slane %v685, 1
  %v687 = vadd.f32 %v685, %v686
  %v688 = vmul.f32 %v687, %v44
  %v689 = vmul.f32 %v679, %v679
  %v690 = vsub.f32 %v688, %v689
  %v691 = vadd.f32 %v690, 1e-05
  %v692 = vrsqrt.pop %v691
  %v693 = vmul.f32 %v32, %v692
  %v694 = vmul.f32 %v679, %v693
  %v695 = vsub.f32 %v33, %v694
  %v696 = vmul.f32 %v693, %v34
  %v697 = vmul.f32 %v695, %v34
  %vm698 = vcmask 811008
  %v699 = vsel %vm698, %v697, 0.0
  %700 = vadd.xlane.f32.xlu0 %v699
  %v701 = vpop.xlane.xlu0 %700
  %v702 = vadd.f32 %v701, %v35
  %v703 = vlaneseq
  %v704 = vshrl.u32 %v703, 7
  %v705 = vsub.s32 0, %v704
  %v706 = vrot.slane %v696, %v705
  %v707 = vmul.f32 %v670, %v706
  %v708 = vsel %vm671, %v707, 0.0
  %709 = vadd.xlane.f32.xlu0 %v708
  %v710 = vpop.xlane.xlu0 %709
  %v711 = vlaneseq
  %v712 = vshrl.u32 %v711, 7
  %v713 = vsub.s32 0, %v712
  %v714 = vrot.slane %v702, %v713
  %v715 = vadd.f32 %v710, %v714
  %v716 = vxor.u32 %v715, 2147483648
  %v717 = vmul.f32 %v716, 1.442695
  %v718 = vpow.pop %v717
  %v719 = vadd.f32 %v718, 1.0
  %v720 = vrcp.pop %v719
  %v721 = vmul.f32 1.0, %v720
  %vm722 = vcmask 7168
  %723 = vst.msk [vmem:[%s6] sm:$0xff] %vm722, %v721
  // Predicated region
  $region26: #{tpu_custom_call.1} parent=0 // pred_check
    _
  $region27: #{tpu_custom_call.1} parent=0 // pred_check_branch
    %725 = sbr.rel (0) target = $region29
  $region28: #{tpu_custom_call.1} parent=0 // pred_region
    _
  $region29: #{tpu_custom_call.1} parent=0 // pred_fallthru
    _
  // Predicated region
  $region30: #{tpu_custom_call.1} parent=0 // pred_check
    _
  $region31: #{tpu_custom_call.1} parent=0 // pred_check_branch
    %727 = sbr.rel (0) target = $region33
  $region32: #{tpu_custom_call.1} parent=0 // pred_region
    _
  $region33: #{tpu_custom_call.1} parent=0 // pred_fallthru
    _

</llo_original>
